<compile_context>
chip_gen: v5e
topology: v5e:2x2
jax: 0.10.0
libtpu: 0.0.40
codegen_flags: <defaults>
</compile_context>

<pallas_src>
import numpy as np
import jax
import jax.numpy as jnp
from jax import lax
from jax.experimental import pallas as pl
from jax.experimental.pallas import tpu as pltpu

LEAKY_SLOPE = 0.01   # torch.nn.LeakyReLU default
BN_EPS = 1e-5        # torch.nn.BatchNorm2d default


def _fused_kernel(x_ref, wf_ref, shift_ref, rep_ref, fmap_ref, o_ref):
    # x_ref:     (1, Cin, gh*W)       original-resolution rows, flattened spatial
    # wf_ref:    (Cout, Cin)          conv weight with BN scale folded in
    # shift_ref: (Cout, 1)            folded conv-bias + BN shift
    # rep_ref:   (gh*W, 4*gh*W)       constant 0/1 nearest-upsample operator
    # fmap_ref:  (1, Cout, 4*gh*W)    skip-connection rows (already 2x resolution)
    # o_ref:     (1, 2, Cout, 4*gh*W) branch 0 = conv path, branch 1 = skip path
    y = jnp.dot(wf_ref[...], x_ref[0], preferred_element_type=jnp.float32)
    y = y + shift_ref[...]                              # folded bias + BN shift
    y = jnp.where(y > 0, y, LEAKY_SLOPE * y)            # LeakyReLU
    # Fused 2x nearest upsample: pure 0/1 matmul -> exact value replication, lane-dense
    # (Cout, 4*gh*W) result written in a single unmasked store.
    up = jnp.dot(y, rep_ref[...], preferred_element_type=jnp.float32)
    o_ref[0, 0] = up.astype(o_ref.dtype)
    o_ref[0, 1] = fmap_ref[0].astype(o_ref.dtype)       # fused channel concat


def _upsample_matrix(gh, W):
    """R[i, j] = 1 iff flat output position j (inside a (2*gh, 2W) tile) is the
    nearest-neighbour copy of flat input position i (inside a (gh, W) tile)."""
    j = np.arange(gh * 4 * W)
    out_row = j // (2 * W)
    out_col = j % (2 * W)
    src = (out_row // 2) * W + (out_col // 2)
    i = np.arange(gh * W)
    return jnp.asarray((i[:, None] == src[None, :]).astype(np.float32))


def _choose_row_chunk(H, W):
    """Input rows per grid step.  Lane widths (gh*W and 4*gh*W) must be multiples of
    128 unless they span the full dim; prefer a chunk that keeps the replication
    matrix small and leaves >= 2 chunks per image (feeds both v7x TensorCores)."""
    candidates = [gh for gh in range(1, H + 1)
                  if H % gh == 0 and (gh * W) % 128 == 0]
    if not candidates:
        return H                      # one full-image block is always BlockSpec-legal
    preferred = [gh for gh in candidates if gh * W <= 512 and H // gh >= 2]
    if preferred:
        return max(preferred)
    return min(candidates)


def upsample_forward(x, feature_map, params):
    """Reproduces UpSample.forward for NCHW inputs.

    x:           (N, C, H, W)
    feature_map: (N, C//2, 2H, 2W)
    returns:     (N, C, 2H, 2W)
    """
    N, C, H, W = x.shape
    Cout = C // 2
    HW = H * W
    gh = _choose_row_chunk(H, W)
    n_chunks = H // gh
    cw = gh * W          # conv-block lane width (original resolution)
    uw = 4 * gh * W      # output-block lane width (2x resolution, rows come in pairs)

    # --- fold conv bias + BatchNorm (eval mode) into the weight / a shift vector ---
    inv_std = lax.rsqrt(params["bn_var"] + BN_EPS)
    scale = params["bn_gamma"] * inv_std                              # (Cout,)
    wf = params["conv_w"][:, :, 0, 0] * scale[:, None]                # (Cout, Cin)
    shift = (scale * (params["conv_b"] - params["bn_mean"])
             + params["bn_beta"])[:, None]                            # (Cout, 1)

    rep = _upsample_matrix(gh, W)                                     # (cw, uw)

    # Free (row-major) reshapes only - no transposes, no materialized upsample.
    x_flat = x.reshape(N, C, HW)
    fmap_flat = feature_map.reshape(N, Cout, 4 * HW)

    flops = 2 * N * HW * C * Cout + 2 * N * Cout * 4 * HW * cw
    bytes_accessed = 4 * (x_flat.size + wf.size + shift.size + rep.size
                          + fmap_flat.size + N * 2 * Cout * 4 * HW)

    out_flat = pl.pallas_call(
        _fused_kernel,
        out_shape=jax.ShapeDtypeStruct((N, 2, Cout, 4 * HW), jnp.float32),
        grid_spec=pltpu.PrefetchScalarGridSpec(
            num_scalar_prefetch=0,
            grid=(N, n_chunks),
            in_specs=[
                pl.BlockSpec((1, C, cw), lambda n, c: (n, 0, c)),
                pl.BlockSpec((Cout, C), lambda n, c: (0, 0)),
                pl.BlockSpec((Cout, 1), lambda n, c: (0, 0)),
                pl.BlockSpec((cw, uw), lambda n, c: (0, 0)),
                pl.BlockSpec((1, Cout, uw), lambda n, c: (n, 0, c)),
            ],
            out_specs=pl.BlockSpec((1, 2, Cout, uw), lambda n, c: (n, 0, 0, c)),
        ),
        compiler_params=pltpu.CompilerParams(
            dimension_semantics=("parallel", "parallel"),
            vmem_limit_bytes=32 * 1024 * 1024),   # well under v7x's 64 MiB physical VMEM
        cost_estimate=pl.CostEstimate(flops=flops, transcendentals=0,
                                      bytes_accessed=bytes_accessed),
    )(x_flat, wf, shift, rep, fmap_flat)

    # (N, 2, Cout, 4HW) -> (N, C, 2H, 2W): pure reshape (conv branch = channels [0, C/2),
    # skip branch = channels [C/2, C)) -> matches torch.cat((out, feature_map), dim=1).
    return out_flat.reshape(N, C, 2 * H, 2 * W)


def make_params(key, channel):
    cout = channel // 2
    k1, k2, k3, k4 = jax.random.split(key, 4)
    return {
        # torch Conv2d weight layout: (Cout, Cin, 1, 1)
        "conv_w": 0.1 * jax.random.normal(k1, (cout, channel, 1, 1), jnp.float32),
        "conv_b": 0.1 * jax.random.normal(k2, (cout,), jnp.float32),
        # BatchNorm2d params / running stats (eval mode)
        "bn_gamma": 1.0 + 0.1 * jax.random.normal(k3, (cout,), jnp.float32),
        "bn_beta": 0.1 * jax.random.normal(k4, (cout,), jnp.float32),
        "bn_mean": jnp.zeros((cout,), jnp.float32),
        "bn_var": jnp.ones((cout,), jnp.float32),
    }


def _reference(x, feature_map, params):
    """Plain-JAX mirror of the torch forward, for a correctness check."""
    up = jnp.repeat(jnp.repeat(x, 2, axis=2), 2, axis=3)
    w = params["conv_w"][:, :, 0, 0]                                  # (Cout, Cin)
    conv = jnp.einsum("nchw,oc->nohw", up, w) + params["conv_b"][None, :, None, None]
    inv_std = 1.0 / jnp.sqrt(params["bn_var"] + BN_EPS)
    bn = (conv - params["bn_mean"][None, :, None, None]) * \
         (params["bn_gamma"] * inv_std)[None, :, None, None] + \
         params["bn_beta"][None, :, None, None]
    act = jnp.where(bn > 0, bn, LEAKY_SLOPE * bn)
    return jnp.concatenate((act, feature_map), axis=1)


if __name__ == "__main__":
    key = jax.random.PRNGKey(0)
    kx, kf, kp = jax.random.split(key, 3)

    N, C, H, W = 2, 4, 16, 16
    x = jax.random.normal(kx, (N, C, H, W), jnp.float32)
    feature_map = jax.random.normal(kf, (N, C // 2, 2 * H, 2 * W), jnp.float32)
    params = make_params(kp, C)

    fwd = jax.jit(upsample_forward)
    out = jax.block_until_ready(fwd(x, feature_map, params))

    ref = _reference(x, feature_map, params)
    assert out.shape == (N, C, 2 * H, 2 * W), out.shape
    assert jnp.allclose(out, ref, atol=1e-5, rtol=1e-5), \
        float(jnp.max(jnp.abs(out - ref)))

    print("KERNEL_OK")
</pallas_src>

<mosaic_0001>
module attributes {stable_mosaic.version = 11 : i64} {
  func.func @_fused_kernel(%arg0: i32, %arg1: i32, %arg2: memref<1x4x128xf32, #tpu.memory_space<vmem>>, %arg3: memref<2x4xf32, #tpu.memory_space<vmem>>, %arg4: memref<2x1xf32, #tpu.memory_space<vmem>>, %arg5: memref<128x512xf32, #tpu.memory_space<vmem>>, %arg6: memref<1x2x512xf32, #tpu.memory_space<vmem>>, %arg7: memref<1x2x2x512xf32, #tpu.memory_space<vmem>>) attributes {dimension_semantics = [#tpu.dimension_semantics<parallel>, #tpu.dimension_semantics<parallel>], iteration_bounds = array<i64: 2, 2>, scalar_prefetch = 0 : i64, scratch_operands = 0 : i64, tpu.core_type = #tpu.core_type<tc>, window_params = [{transform_indices = @transform_0, window_bounds = array<i64: 1, 4, 128>}, {pipeline_mode = #tpu.pipeline_mode<synchronous>, transform_indices = @transform_1, window_bounds = array<i64: 2, 4>}, {pipeline_mode = #tpu.pipeline_mode<synchronous>, transform_indices = @transform_2, window_bounds = array<i64: 2, 1>}, {pipeline_mode = #tpu.pipeline_mode<synchronous>, transform_indices = @transform_3, window_bounds = array<i64: 128, 512>}, {transform_indices = @transform_4, window_bounds = array<i64: 1, 2, 512>}, {transform_indices = @transform_5, window_bounds = array<i64: 1, 2, 2, 512>}]} {
    %c0 = arith.constant 0 : index
    %c0_0 = arith.constant 0 : index
    %0 = vector.load %arg3[%c0, %c0_0] : memref<2x4xf32, #tpu.memory_space<vmem>>, vector<2x4xf32>
    %c0_1 = arith.constant 0 : index
    %c0_2 = arith.constant 0 : index
    %c0_3 = arith.constant 0 : index
    %1 = vector.load %arg2[%c0_1, %c0_2, %c0_3] : memref<1x4x128xf32, #tpu.memory_space<vmem>>, vector<1x4x128xf32>
    %2 = vector.shape_cast %1 : vector<1x4x128xf32> to vector<4x128xf32>
    %cst = arith.constant dense<0.000000e+00> : vector<2x128xf32>
    %3 = tpu.matmul %0, %2, %cst {dimension_numbers = #tpu.dot_dimension_numbers<[1], [0], [0], [1], [0, 0, 1, 1], [], []>} : vector<2x4xf32>, vector<4x128xf32>, vector<2x128xf32> -> vector<2x128xf32>
    %c0_4 = arith.constant 0 : index
    %c0_5 = arith.constant 0 : index
    %4 = vector.load %arg4[%c0_4, %c0_5] : memref<2x1xf32, #tpu.memory_space<vmem>>, vector<2x1xf32>
    %5 = vector.broadcast %4 : vector<2x1xf32> to vector<2x128xf32>
    %6 = arith.addf %3, %5 : vector<2x128xf32>
    %cst_6 = arith.constant 0.000000e+00 : f32
    %7 = vector.broadcast %cst_6 : f32 to vector<2x128xf32>
    %8 = arith.cmpf ogt, %6, %7 : vector<2x128xf32>
    %cst_7 = arith.constant 0.00999999977 : f32
    %9 = vector.broadcast %cst_7 : f32 to vector<2x128xf32>
    %10 = arith.mulf %9, %6 : vector<2x128xf32>
    %11 = arith.select %8, %6, %10 : vector<2x128xi1>, vector<2x128xf32>
    %c0_8 = arith.constant 0 : index
    %c0_9 = arith.constant 0 : index
    %12 = vector.load %arg5[%c0_8, %c0_9] : memref<128x512xf32, #tpu.memory_space<vmem>>, vector<128x512xf32>
    %cst_10 = arith.constant dense<0.000000e+00> : vector<2x512xf32>
    %13 = tpu.matmul %11, %12, %cst_10 {dimension_numbers = #tpu.dot_dimension_numbers<[1], [0], [0], [1], [0, 0, 1, 1], [], []>} : vector<2x128xf32>, vector<128x512xf32>, vector<2x512xf32> -> vector<2x512xf32>
    %c0_11 = arith.constant 0 : index
    %c0_12 = arith.constant 0 : index
    %c0_13 = arith.constant 0 : index
    %c0_14 = arith.constant 0 : index
    %14 = vector.load %arg7[%c0_11, %c0_12, %c0_13, %c0_14] : memref<1x2x2x512xf32, #tpu.memory_space<vmem>>, vector<1x1x2x512xf32>
    %15 = vector.shape_cast %14 : vector<1x1x2x512xf32> to vector<2x512xf32>
    %16 = vector.shape_cast %13 : vector<2x512xf32> to vector<1x1x2x512xf32>
    tpu.vector_store %arg7[%c0_11, %c0_12, %c0_13, %c0_14], %16 {strides = array<i32>} : memref<1x2x2x512xf32, #tpu.memory_space<vmem>>, vector<1x1x2x512xf32>,
    %c0_15 = arith.constant 0 : index
    %c0_16 = arith.constant 0 : index
    %c0_17 = arith.constant 0 : index
    %17 = vector.load %arg6[%c0_15, %c0_16, %c0_17] : memref<1x2x512xf32, #tpu.memory_space<vmem>>, vector<1x2x512xf32>
    %18 = vector.shape_cast %17 : vector<1x2x512xf32> to vector<2x512xf32>
    %c0_18 = arith.constant 0 : index
    %c1 = arith.constant 1 : index
    %c0_19 = arith.constant 0 : index
    %c0_20 = arith.constant 0 : index
    %19 = vector.load %arg7[%c0_18, %c1, %c0_19, %c0_20] : memref<1x2x2x512xf32, #tpu.memory_space<vmem>>, vector<1x1x2x512xf32>
    %20 = vector.shape_cast %19 : vector<1x1x2x512xf32> to vector<2x512xf32>
    %21 = vector.shape_cast %18 : vector<2x512xf32> to vector<1x1x2x512xf32>
    tpu.vector_store %arg7[%c0_18, %c1, %c0_19, %c0_20], %21 {strides = array<i32>} : memref<1x2x2x512xf32, #tpu.memory_space<vmem>>, vector<1x1x2x512xf32>,
    return
  }
  func.func @transform_0(%arg0: i32, %arg1: i32) -> (i32, i32, i32) {
    %c0_i32 = arith.constant 0 : i32
    %c0_i32_0 = arith.constant 0 : i32
    return %arg0, %c0_i32, %arg1 : i32, i32, i32
  }
  func.func @transform_1(%arg0: i32, %arg1: i32) -> (i32, i32) {
    %c0_i32 = arith.constant 0 : i32
    %c0_i32_0 = arith.constant 0 : i32
    %c0_i32_1 = arith.constant 0 : i32
    return %c0_i32, %c0_i32_0 : i32, i32
  }
  func.func @transform_2(%arg0: i32, %arg1: i32) -> (i32, i32) {
    %c0_i32 = arith.constant 0 : i32
    %c0_i32_0 = arith.constant 0 : i32
    %c0_i32_1 = arith.constant 0 : i32
    return %c0_i32, %c0_i32_0 : i32, i32
  }
  func.func @transform_3(%arg0: i32, %arg1: i32) -> (i32, i32) {
    %c0_i32 = arith.constant 0 : i32
    %c0_i32_0 = arith.constant 0 : i32
    %c0_i32_1 = arith.constant 0 : i32
    return %c0_i32, %c0_i32_0 : i32, i32
  }
  func.func @transform_4(%arg0: i32, %arg1: i32) -> (i32, i32, i32) {
    %c0_i32 = arith.constant 0 : i32
    %c0_i32_0 = arith.constant 0 : i32
    return %arg0, %c0_i32, %arg1 : i32, i32, i32
  }
  func.func @transform_5(%arg0: i32, %arg1: i32) -> (i32, i32, i32, i32) {
    %c0_i32 = arith.constant 0 : i32
    %c0_i32_0 = arith.constant 0 : i32
    %c0_i32_1 = arith.constant 0 : i32
    return %arg0, %c0_i32, %c0_i32_0, %arg1 : i32, i32, i32, i32
  }
}

</mosaic_0001>

<llo_original>
// kernel: upsample_forward.1
$region0: #{upsample_forward.1}
  #allocation0 [shape = 'u32[]', space=smem, size = 0x4, offset = 0x4, fixed_abs, tag = 'smem constant byte address 0x4 - core index']
  #allocation1 [shape = 'u32[72,128]{1,0:T(1,128)}', space=vmem, size = 0x9000, scoped, tag = 'internal scratch']
  %s0 = inlined_call_operand.vmem [shape: f32[2,4,256], index: 0, kind: input, shape index: {}]
  %s1 = inlined_call_operand.vmem [shape: f32[2,4], index: 1, kind: input, shape index: {}]
  %s2 = inlined_call_operand.vmem [shape: f32[2,1], index: 2, kind: input, shape index: {}]
  %s3 = inlined_call_operand.hbm [shape: f32[128,512], index: 3, kind: input, shape index: {}]
  %s4 = inlined_call_operand.vmem [shape: f32[2,2,1024], index: 4, kind: input, shape index: {}]
  %s5 = inlined_call_operand.vmem [shape: f32[2,2,2,1024], index: 5, kind: output, shape index: {}]
  %s6 = sld [smem:[#allocation0]]
  $region91: #{upsample_forward.1} parent=0
    _
  %s8 = ssub.s32 1, %s6
  %s9 = scalar_select 0, %s8, %s6
  $region1: #{upsample_forward.1} parent=0
    #allocation2 [shape = 'u8[262144]{0}', space=vmem, size = 0x40000, scoped, tag = 'input window, operand 3, single buffered']
    #allocation3 [shape = 's32[2]{0}', space=sflag, size = 0x8, scoped, tag = 'scoped memory for upsample_forward.1']
    #allocation4 [shape = 'u8[16384]{0}', space=vmem, size = 0x4000, scoped, tag = 'output window, operand 0']
    %10 = vsyncpa [#allocation3], 0
    loop: start=0, step=1, limit=6
    $region2: #{upsample_forward.1} parent=1 // loop_pre_header
      _
    $region3: #{upsample_forward.1} parent=1 // loop_header
      %s12 = sphi 0, %s16
      %p13 = scmp.ge.s32.totalorder %s12, 6
      %s19 = sphi 0, %s31
      %s20 = sphi 0, %s27
      %s21 = sphi 0, %s19
      %s22 = sphi 0, %s20
      %s23 = sphi 0, %s21
      %s24 = sphi 0, %s22
      %s36 = sphi 0, %s38
      %s39 = sphi 0, %s36
      %s40 = sphi 0, %s39
      %s56 = sphi 0, %s40
      %s60 = sphi 0, %s60
      %s62 = sphi 0, %s60
      %s63 = sphi 0, %s62
      %s77 = sphi 0, %s63
      %s81 = sphi 0, %s81
      %s83 = sphi 0, %s81
      %s84 = sphi 0, %s83
      %s98 = sphi 0, %s84
      %s102 = sphi 0, %s102
      %s104 = sphi 0, %s102
      %s105 = sphi 0, %s104
      %s119 = sphi 0, %s105
      %s127 = sphi 0, %s129
      %s130 = sphi 0, %s127
      %s131 = sphi 0, %s130
      %s147 = sphi 0, %s131
      %s155 = sphi 0, %s157
      %s158 = sphi 0, %s155
      %s159 = sphi 0, %s158
      %s175 = sphi 0, %s159
    $region4: #{upsample_forward.1} parent=1 // loop_header_branch
      %15 = sbr.rel (%p13) target = $region8
    $region5: #{upsample_forward.1} parent=1 // loop_body
      %s17 = ssub.s32 %s12, 1
      %s18 = ssub.s32 %s12, 2
      %s25 = sadd.s32 1, %s20
      %p26 = scmp.ge.s32.totalorder %s25, 2
      %s27 = scalar_select %p26, 0, %s25
      %s28 = sadd.s32 1, %s19
      %s29 = scalar_select %p26, %s28, %s19
      %p30 = scmp.ge.s32.totalorder %s29, 2
      %s31 = scalar_select %p30, 0, %s29
      %s32 = ssub.s32 %s19, %s31
      %s33 = ssub.s32 %s20, %s27
      %s34 = sor.u32 %s32, %s33
      %p35 = scmp.eq.s32.totalorder %s34, 0
      %s37 = sadd.s32 %s36, 1
      %s38 = scalar_select %p35, %s36, %s37
      %p41 = pneg %p35
      %p42 = scmp.eq.s32.totalorder %s12, 3
      %p43 = por %p41, %p42
      %p44 = scmp.ne.s32.totalorder %s36, %s39
      %p45 = scmp.eq.s32.totalorder %s12, 0
      %p46 = por %p44, %p45
      %p47 = scmp.ne.s32.totalorder %s36, %s39
      %p48 = scmp.eq.s32.totalorder %s17, 3
      %p49 = por %p47, %p48
      %p50 = scmp.ne.s32.totalorder %s39, %s40
      %p51 = scmp.eq.s32.totalorder %s17, 0
      %p52 = por %p50, %p51
      %p53 = scmp.ne.s32.totalorder %s39, %s40
      %p54 = scmp.eq.s32.totalorder %s18, 3
      %p55 = por %p53, %p54
      %p57 = scmp.ne.s32.totalorder %s40, %s56
      %p58 = scmp.eq.s32.totalorder %s18, 0
      %p59 = por %p57, %p58
      %s61 = sadd.s32 %s60, 1
      %p64 = scmp.eq.s32.totalorder %s12, 3
      %p65 = scmp.ne.s32.totalorder %s60, %s62
      %p66 = scmp.eq.s32.totalorder %s12, 0
      %p67 = por %p65, %p66
      %p68 = scmp.ne.s32.totalorder %s60, %s62
      %p69 = scmp.eq.s32.totalorder %s17, 3
      %p70 = por %p68, %p69
      %p71 = scmp.ne.s32.totalorder %s62, %s63
      %p72 = scmp.eq.s32.totalorder %s17, 0
      %p73 = por %p71, %p72
      %p74 = scmp.ne.s32.totalorder %s62, %s63
      %p75 = scmp.eq.s32.totalorder %s18, 3
      %p76 = por %p74, %p75
      %p78 = scmp.ne.s32.totalorder %s63, %s77
      %p79 = scmp.eq.s32.totalorder %s18, 0
      %p80 = por %p78, %p79
      %s82 = sadd.s32 %s81, 1
      %p85 = scmp.eq.s32.totalorder %s12, 3
      %p86 = scmp.ne.s32.totalorder %s81, %s83
      %p87 = scmp.eq.s32.totalorder %s12, 0
      %p88 = por %p86, %p87
      %p89 = scmp.ne.s32.totalorder %s81, %s83
      %p90 = scmp.eq.s32.totalorder %s17, 3
      %p91 = por %p89, %p90
      %p92 = scmp.ne.s32.totalorder %s83, %s84
      %p93 = scmp.eq.s32.totalorder %s17, 0
      %p94 = por %p92, %p93
      %p95 = scmp.ne.s32.totalorder %s83, %s84
      %p96 = scmp.eq.s32.totalorder %s18, 3
      %p97 = por %p95, %p96
      %p99 = scmp.ne.s32.totalorder %s84, %s98
      %p100 = scmp.eq.s32.totalorder %s18, 0
      %p101 = por %p99, %p100
      %s103 = sadd.s32 %s102, 1
      %p106 = scmp.eq.s32.totalorder %s12, 3
      %p107 = scmp.ne.s32.totalorder %s102, %s104
      %p108 = scmp.eq.s32.totalorder %s12, 0
      %p109 = por %p107, %p108
      %p110 = scmp.ne.s32.totalorder %s102, %s104
      %p111 = scmp.eq.s32.totalorder %s17, 3
      %p112 = por %p110, %p111
      %p113 = scmp.ne.s32.totalorder %s104, %s105
      %p114 = scmp.eq.s32.totalorder %s17, 0
      %p115 = por %p113, %p114
      %p116 = scmp.ne.s32.totalorder %s104, %s105
      %p117 = scmp.eq.s32.totalorder %s18, 3
      %p118 = por %p116, %p117
      %p120 = scmp.ne.s32.totalorder %s105, %s119
      %p121 = scmp.eq.s32.totalorder %s18, 0
      %p122 = por %p120, %p121
      %s123 = ssub.s32 %s19, %s31
      %s124 = ssub.s32 %s20, %s27
      %s125 = sor.u32 %s123, %s124
      %p126 = scmp.eq.s32.totalorder %s125, 0
      %s128 = sadd.s32 %s127, 1
      %s129 = scalar_select %p126, %s127, %s128
      %p132 = pneg %p126
      %p133 = scmp.eq.s32.totalorder %s12, 3
      %p134 = por %p132, %p133
      %p135 = scmp.ne.s32.totalorder %s127, %s130
      %p136 = scmp.eq.s32.totalorder %s12, 0
      %p137 = por %p135, %p136
      %p138 = scmp.ne.s32.totalorder %s127, %s130
      %p139 = scmp.eq.s32.totalorder %s17, 3
      %p140 = por %p138, %p139
      %p141 = scmp.ne.s32.totalorder %s130, %s131
      %p142 = scmp.eq.s32.totalorder %s17, 0
      %p143 = por %p141, %p142
      %p144 = scmp.ne.s32.totalorder %s130, %s131
      %p145 = scmp.eq.s32.totalorder %s18, 3
      %p146 = por %p144, %p145
      %p148 = scmp.ne.s32.totalorder %s131, %s147
      %p149 = scmp.eq.s32.totalorder %s18, 0
      %p150 = por %p148, %p149
      %s151 = ssub.s32 %s19, %s31
      %s152 = ssub.s32 %s20, %s27
      %s153 = sor.u32 %s151, %s152
      %p154 = scmp.eq.s32.totalorder %s153, 0
      %s156 = sadd.s32 %s155, 1
      %s157 = scalar_select %p154, %s155, %s156
      %p160 = pneg %p154
      %p161 = scmp.eq.s32.totalorder %s12, 3
      %p162 = por %p160, %p161
      %p163 = scmp.ne.s32.totalorder %s155, %s158
      %p164 = scmp.eq.s32.totalorder %s12, 0
      %p165 = por %p163, %p164
      %p166 = scmp.ne.s32.totalorder %s155, %s158
      %p167 = scmp.eq.s32.totalorder %s17, 3
      %p168 = por %p166, %p167
      %p169 = scmp.ne.s32.totalorder %s158, %s159
      %p170 = scmp.eq.s32.totalorder %s17, 0
      %p171 = por %p169, %p170
      %p172 = scmp.ne.s32.totalorder %s158, %s159
      %p173 = scmp.eq.s32.totalorder %s18, 3
      %p174 = por %p172, %p173
      %p176 = scmp.ne.s32.totalorder %s159, %s175
      %p177 = scmp.eq.s32.totalorder %s18, 0
      %p178 = por %p176, %p177
      %p179 = scmp.le.s32.totalorder 1, %s12
      %p180 = scmp.lt.s32.totalorder %s12, 5
      %p181 = pnand %p179, %p180
      %p182 = pneg %p181
      // Predicated region
      $region9: #{upsample_forward.1} parent=5 // pred_check
        _
      $region10: #{upsample_forward.1} parent=5 // pred_check_branch
        %184 = sbr.rel (%p181) target = $region12
      $region11: #{upsample_forward.1} parent=5 // pred_region
        %s185 = ssub.s32 %s12, 1
        // Predicated region
        $region13: #{upsample_forward.1} parent=11 // pred_check
          %p186 = pneg %p73
        $region14: #{upsample_forward.1} parent=11 // pred_check_branch
          %188 = sbr.rel (%p186) target = $region16
        $region15: #{upsample_forward.1} parent=11 // pred_region
          _
        $region16: #{upsample_forward.1} parent=11 // pred_fallthru
          _
        // Predicated region
        $region17: #{upsample_forward.1} parent=11 // pred_check
          %p189 = pneg %p94
        $region18: #{upsample_forward.1} parent=11 // pred_check_branch
          %191 = sbr.rel (%p189) target = $region20
        $region19: #{upsample_forward.1} parent=11 // pred_region
          _
        $region20: #{upsample_forward.1} parent=11 // pred_fallthru
          _
        // Predicated region
        $region21: #{upsample_forward.1} parent=11 // pred_check
          %p192 = pneg %p115
        $region22: #{upsample_forward.1} parent=11 // pred_check_branch
          %194 = sbr.rel (%p192) target = $region24
        $region23: #{upsample_forward.1} parent=11 // pred_region
          %196 = vsyncadd [#allocation3], 0
          %s197 = sshll.u32 %s3, 4
          %s198 = int_to_ptr.hbm [resolvable:$true] %s197
          %s199 = sshll.u32 [#allocation2], 4
          %s200 = int_to_ptr.vmem [resolvable:$true] %s199
          %205 = dma.hbm_to_vmem [thread:$0]  %s198, 8192, %s200, [#allocation3], 512, 512, 32
        $region24: #{upsample_forward.1} parent=11 // pred_fallthru
          _
      $region12: #{upsample_forward.1} parent=5 // pred_fallthru
        _
      %p206 = scmp.lt.s32.totalorder %s12, 4
      // Predicated region
      $region25: #{upsample_forward.1} parent=5 // pred_check
        %p207 = pneg %p206
      $region26: #{upsample_forward.1} parent=5 // pred_check_branch
        %209 = sbr.rel (%p207) target = $region28
      $region27: #{upsample_forward.1} parent=5 // pred_region
        // Predicated region
        $region29: #{upsample_forward.1} parent=27 // pred_check
          %p210 = pneg %p46
        $region30: #{upsample_forward.1} parent=27 // pred_check_branch
          %212 = sbr.rel (%p210) target = $region32
        $region31: #{upsample_forward.1} parent=27 // pred_region
          %p213 = scmp.lt.s32.totalorder %s19, 1
          %s214 = scalar_select %p213, %s19, 1
          %p215 = scmp.lt.s32.totalorder %s20, 1
          %s216 = scalar_select %p215, %s20, 1
          %s217 = smul.addr %s214, 2
          %s218 = sadd.s32 %s216, %s217
          %s219 = smul.addr %s218, 4
          %s220 = scalar_lea.vmem %s0, %s219
        $region32: #{upsample_forward.1} parent=27 // pred_fallthru
          _
        // Predicated region
        $region33: #{upsample_forward.1} parent=27 // pred_check
          %p221 = pneg %p137
        $region34: #{upsample_forward.1} parent=27 // pred_check_branch
          %223 = sbr.rel (%p221) target = $region36
        $region35: #{upsample_forward.1} parent=27 // pred_region
          %s224 = smul.u32 4, %s20
          %p225 = scmp.lt.s32.totalorder %s19, 1
          %s226 = scalar_select %p225, %s19, 1
          %p227 = scmp.lt.s32.totalorder %s224, 7
          %s228 = scalar_select %p227, %s224, 7
          %s229 = smul.addr %s226, 8
          %s230 = sadd.s32 %s228, %s229
          %s231 = smul.addr %s230, 2
          %s232 = scalar_lea.vmem %s4, %s231
          %s233 = smul.u32 4, %s20
        $region36: #{upsample_forward.1} parent=27 // pred_fallthru
          _
      $region28: #{upsample_forward.1} parent=5 // pred_fallthru
        _
      %p234 = scmp.le.s32.totalorder 1, %s12
      %p235 = scmp.lt.s32.totalorder %s12, 5
      %p236 = pnand %p234, %p235
      %p237 = pneg %p236
      // Predicated region
      $region37: #{upsample_forward.1} parent=5 // pred_check
        _
      $region38: #{upsample_forward.1} parent=5 // pred_check_branch
        %239 = sbr.rel (%p236) target = $region40
      $region39: #{upsample_forward.1} parent=5 // pred_region
        %s240 = ssub.s32 %s12, 1
        // Predicated region
        $region41: #{upsample_forward.1} parent=39 // pred_check
          %p241 = pneg %p115
        $region42: #{upsample_forward.1} parent=39 // pred_check_branch
          %243 = sbr.rel (%p241) target = $region44
        $region43: #{upsample_forward.1} parent=39 // pred_region
          %245 = dma.done [#allocation3], 8192
        $region44: #{upsample_forward.1} parent=39 // pred_fallthru
          _
        %p246 = scmp.lt.s32.totalorder %s21, 1
        %s247 = scalar_select %p246, %s21, 1
        %p248 = scmp.lt.s32.totalorder %s22, 1
        %s249 = scalar_select %p248, %s22, 1
        %s250 = smul.addr %s247, 2
        %s251 = sadd.s32 %s249, %s250
        %s252 = smul.addr %s251, 4
        %s253 = scalar_lea.vmem %s0, %s252
        %p254 = pneg %p52
        %p255 = pneg %p49
        %p256 = pneg %p73
        %p257 = pneg %p70
        %p258 = pneg %p94
        %p259 = pneg %p91
        %p260 = pneg %p115
        %p261 = pneg %p112
        %s262 = smul.u32 4, %s22
        %p263 = scmp.lt.s32.totalorder %s21, 1
        %s264 = scalar_select %p263, %s21, 1
        %p265 = scmp.lt.s32.totalorder %s262, 7
        %s266 = scalar_select %p265, %s262, 7
        %s267 = smul.addr %s264, 8
        %s268 = sadd.s32 %s266, %s267
        %s269 = smul.addr %s268, 2
        %s270 = scalar_lea.vmem %s4, %s269
        %p271 = pneg %p143
        %p272 = pneg %p140
        %p273 = pneg %p171
        %p274 = pneg %p168
        %s275 = sand.u32 %s158, 1
        %s276 = sand.u32 %s158, 1
        %s277 = smul.addr %s276, 16
        %s278 = scalar_lea.vmem [#allocation4], %s277
        %p279 = scmp.lt.s32.totalorder %s21, 1
        %s280 = scalar_select %p279, %s21, 1
        %p281 = scmp.lt.s32.totalorder %s22, 1
        %s282 = scalar_select %p281, %s22, 1
        %s283 = smul.addr %s280, 2
        %s284 = sadd.s32 %s282, %s283
        %s285 = smul.addr %s284, 4
        %s286 = scalar_lea.vmem %s0, %s285
        %s287 = smul.u32 4, %s22
        %p288 = scmp.lt.s32.totalorder %s21, 1
        %s289 = scalar_select %p288, %s21, 1
        %p290 = scmp.lt.s32.totalorder %s287, 7
        %s291 = scalar_select %p290, %s287, 7
        %s292 = smul.addr %s289, 8
        %s293 = sadd.s32 %s291, %s292
        %s294 = smul.addr %s293, 2
        %s295 = scalar_lea.vmem %s4, %s294
        %s296 = smul.u32 4, %s22
        %s297 = smul.u32 4, %s22
        %v298 = vld [vmem:[%s1] sm:$0x3]
        %v299 = vld [vmem:[%s286] sm:$0xf]
        %v300 = vld [vmem:[%s2] sm:$0x3]
        %302 = vset.pattern.permute.xlu0 0
        %303 = vperm.xlu0 %302, %v300
        %v304 = vpop.permute.xlu0 %303
        %vm306 = vcmask 31744
        %v308 = vsel %vm306, %v298, 0
        %vm310 = vcmask 1043456
        %v312 = vsel %vm310, %v299, 0
        %314 = vmatpush.msra.mxu0 0.0
        %315 = vmatpush.msra.mxu0 0.0
        %316 = vmatpush.msra.mxu0 0.0
        %317 = vmatpush.msra.mxu0 0.0
        %318 = vmatpush.msra.mxu0 0.0
        %319 = vmatpush.msra.mxu0 0.0
        %320 = vmatpush.msra.mxu0 0.0
        %321 = vmatpush.msra.mxu0 0.0
        %322 = vmatpush.msra.mxu0 0.0
        %323 = vmatpush.msra.mxu0 0.0
        %324 = vmatpush.msra.mxu0 0.0
        %325 = vmatpush.msra.mxu0 0.0
        %326 = vmatpush.msra.mxu0 0.0
        %327 = vmatpush.msra.mxu0 0.0
        %328 = vmatpush.msra.mxu0 0.0
        %329 = vmatpush.msra.mxu0 %v312
        %330 = vmatmul.f32.gmra.mxu0 %v308
        %v331 = vpop.f32.mrf.mxu0
        %v332 = vadd.f32 %v304, %v331
        %333 = vdwg.mxu0
        %vm334 = vcmp.gt.f32.partialorder %v332, 0.0
        %v335 = vmul.f32 %v332, 0.01
        %v336 = vsel %vm334, %v332, %v335
        %v337 = vld [vmem:[#allocation2] sm:$0xff]
        %v338 = vld [vmem:[#allocation2 + $0x8] sm:$0xff]
        %v339 = vld [vmem:[#allocation2 + $0x10] sm:$0xff]
        %v340 = vld [vmem:[#allocation2 + $0x18] sm:$0xff]
        %v341 = vld [vmem:[#allocation2 + $0x20] sm:$0xff]
        %v342 = vld [vmem:[#allocation2 + $0x28] sm:$0xff]
        %v343 = vld [vmem:[#allocation2 + $0x30] sm:$0xff]
        %v344 = vld [vmem:[#allocation2 + $0x38] sm:$0xff]
        %v345 = vld [vmem:[#allocation2 + $0x40] sm:$0xff]
        %v346 = vld [vmem:[#allocation2 + $0x48] sm:$0xff]
        %v347 = vld [vmem:[#allocation2 + $0x50] sm:$0xff]
        %v348 = vld [vmem:[#allocation2 + $0x58] sm:$0xff]
        %v349 = vld [vmem:[#allocation2 + $0x60] sm:$0xff]
        %v350 = vld [vmem:[#allocation2 + $0x68] sm:$0xff]
        %v351 = vld [vmem:[#allocation2 + $0x70] sm:$0xff]
        %v352 = vld [vmem:[#allocation2 + $0x78] sm:$0xff]
        %v353 = vld [vmem:[#allocation2 + $0x80] sm:$0xff]
        %v354 = vld [vmem:[#allocation2 + $0x88] sm:$0xff]
        %v355 = vld [vmem:[#allocation2 + $0x90] sm:$0xff]
        %v356 = vld [vmem:[#allocation2 + $0x98] sm:$0xff]
        %v357 = vld [vmem:[#allocation2 + $0xa0] sm:$0xff]
        %v358 = vld [vmem:[#allocation2 + $0xa8] sm:$0xff]
        %v359 = vld [vmem:[#allocation2 + $0xb0] sm:$0xff]
        %v360 = vld [vmem:[#allocation2 + $0xb8] sm:$0xff]
        %v361 = vld [vmem:[#allocation2 + $0xc0] sm:$0xff]
        %v362 = vld [vmem:[#allocation2 + $0xc8] sm:$0xff]
        %v363 = vld [vmem:[#allocation2 + $0xd0] sm:$0xff]
        %v364 = vld [vmem:[#allocation2 + $0xd8] sm:$0xff]
        %v365 = vld [vmem:[#allocation2 + $0xe0] sm:$0xff]
        %v366 = vld [vmem:[#allocation2 + $0xe8] sm:$0xff]
        %v367 = vld [vmem:[#allocation2 + $0xf0] sm:$0xff]
        %v368 = vld [vmem:[#allocation2 + $0xf8] sm:$0xff]
        %v369 = vld [vmem:[#allocation2 + $0x100] sm:$0xff]
        %v370 = vld [vmem:[#allocation2 + $0x108] sm:$0xff]
        %v371 = vld [vmem:[#allocation2 + $0x110] sm:$0xff]
        %v372 = vld [vmem:[#allocation2 + $0x118] sm:$0xff]
        %v373 = vld [vmem:[#allocation2 + $0x120] sm:$0xff]
        %v374 = vld [vmem:[#allocation2 + $0x128] sm:$0xff]
        %v375 = vld [vmem:[#allocation2 + $0x130] sm:$0xff]
        %v376 = vld [vmem:[#allocation2 + $0x138] sm:$0xff]
        %v377 = vld [vmem:[#allocation2 + $0x140] sm:$0xff]
        %v378 = vld [vmem:[#allocation2 + $0x148] sm:$0xff]
        %v379 = vld [vmem:[#allocation2 + $0x150] sm:$0xff]
        %v380 = vld [vmem:[#allocation2 + $0x158] sm:$0xff]
        %v381 = vld [vmem:[#allocation2 + $0x160] sm:$0xff]
        %v382 = vld [vmem:[#allocation2 + $0x168] sm:$0xff]
        %v383 = vld [vmem:[#allocation2 + $0x170] sm:$0xff]
        %v384 = vld [vmem:[#allocation2 + $0x178] sm:$0xff]
        %v385 = vld [vmem:[#allocation2 + $0x180] sm:$0xff]
        %v386 = vld [vmem:[#allocation2 + $0x188] sm:$0xff]
        %v387 = vld [vmem:[#allocation2 + $0x190] sm:$0xff]
        %v388 = vld [vmem:[#allocation2 + $0x198] sm:$0xff]
        %v389 = vld [vmem:[#allocation2 + $0x1a0] sm:$0xff]
        %v390 = vld [vmem:[#allocation2 + $0x1a8] sm:$0xff]
        %v391 = vld [vmem:[#allocation2 + $0x1b0] sm:$0xff]
        %v392 = vld [vmem:[#allocation2 + $0x1b8] sm:$0xff]
        %v393 = vld [vmem:[#allocation2 + $0x1c0] sm:$0xff]
        %v394 = vld [vmem:[#allocation2 + $0x1c8] sm:$0xff]
        %v395 = vld [vmem:[#allocation2 + $0x1d0] sm:$0xff]
        %v396 = vld [vmem:[#allocation2 + $0x1d8] sm:$0xff]
        %v397 = vld [vmem:[#allocation2 + $0x1e0] sm:$0xff]
        %v398 = vld [vmem:[#allocation2 + $0x1e8] sm:$0xff]
        %v399 = vld [vmem:[#allocation2 + $0x1f0] sm:$0xff]
        %v400 = vld [vmem:[#allocation2 + $0x1f8] sm:$0xff]
        %401 = vmatpush.msra.mxu0 %v397
        %402 = vmatpush.msra.mxu0 %v393
        %403 = vmatpush.msra.mxu0 %v389
        %404 = vmatpush.msra.mxu0 %v385
        %405 = vmatpush.msra.mxu0 %v381
        %406 = vmatpush.msra.mxu0 %v377
        %407 = vmatpush.msra.mxu0 %v373
        %408 = vmatpush.msra.mxu0 %v369
        %409 = vmatpush.msra.mxu0 %v365
        %410 = vmatpush.msra.mxu0 %v361
        %411 = vmatpush.msra.mxu0 %v357
        %412 = vmatpush.msra.mxu0 %v353
        %413 = vmatpush.msra.mxu0 %v349
        %414 = vmatpush.msra.mxu0 %v345
        %415 = vmatpush.msra.mxu0 %v341
        %416 = vmatpush.msra.mxu0 %v337
        %417 = vmatmul.f32.gmra.mxu0 %v336
        %v418 = vpop.f32.mrf.mxu0
        %v419 = vadd.f32 0.0, %v418
        %420 = vdwg.mxu0
        %421 = vmatpush.msra.mxu0 %v398
        %422 = vmatpush.msra.mxu0 %v394
        %423 = vmatpush.msra.mxu0 %v390
        %424 = vmatpush.msra.mxu0 %v386
        %425 = vmatpush.msra.mxu0 %v382
        %426 = vmatpush.msra.mxu0 %v378
        %427 = vmatpush.msra.mxu0 %v374
        %428 = vmatpush.msra.mxu0 %v370
        %429 = vmatpush.msra.mxu0 %v366
        %430 = vmatpush.msra.mxu0 %v362
        %431 = vmatpush.msra.mxu0 %v358
        %432 = vmatpush.msra.mxu0 %v354
        %433 = vmatpush.msra.mxu0 %v350
        %434 = vmatpush.msra.mxu0 %v346
        %435 = vmatpush.msra.mxu0 %v342
        %436 = vmatpush.msra.mxu0 %v338
        %437 = vmatmul.f32.gmra.mxu0 %v336
        %v438 = vpop.f32.mrf.mxu0
        %v439 = vadd.f32 0.0, %v438
        %440 = vdwg.mxu0
        %441 = vmatpush.msra.mxu0 %v399
        %442 = vmatpush.msra.mxu0 %v395
        %443 = vmatpush.msra.mxu0 %v391
        %444 = vmatpush.msra.mxu0 %v387
        %445 = vmatpush.msra.mxu0 %v383
        %446 = vmatpush.msra.mxu0 %v379
        %447 = vmatpush.msra.mxu0 %v375
        %448 = vmatpush.msra.mxu0 %v371
        %449 = vmatpush.msra.mxu0 %v367
        %450 = vmatpush.msra.mxu0 %v363
        %451 = vmatpush.msra.mxu0 %v359
        %452 = vmatpush.msra.mxu0 %v355
        %453 = vmatpush.msra.mxu0 %v351
        %454 = vmatpush.msra.mxu0 %v347
        %455 = vmatpush.msra.mxu0 %v343
        %456 = vmatpush.msra.mxu0 %v339
        %457 = vmatmul.f32.gmra.mxu0 %v336
        %v458 = vpop.f32.mrf.mxu0
        %v459 = vadd.f32 0.0, %v458
        %460 = vdwg.mxu0
        %461 = vmatpush.msra.mxu0 %v400
        %462 = vmatpush.msra.mxu0 %v396
        %463 = vmatpush.msra.mxu0 %v392
        %464 = vmatpush.msra.mxu0 %v388
        %465 = vmatpush.msra.mxu0 %v384
        %466 = vmatpush.msra.mxu0 %v380
        %467 = vmatpush.msra.mxu0 %v376
        %468 = vmatpush.msra.mxu0 %v372
        %469 = vmatpush.msra.mxu0 %v368
        %470 = vmatpush.msra.mxu0 %v364
        %471 = vmatpush.msra.mxu0 %v360
        %472 = vmatpush.msra.mxu0 %v356
        %473 = vmatpush.msra.mxu0 %v352
        %474 = vmatpush.msra.mxu0 %v348
        %475 = vmatpush.msra.mxu0 %v344
        %476 = vmatpush.msra.mxu0 %v340
        %477 = vmatmul.f32.gmra.mxu0 %v336
        %v478 = vpop.f32.mrf.mxu0
        %v479 = vadd.f32 0.0, %v478
        %480 = vdwg.mxu0
        %v485 = vrot.slane %v439, 6
        %v486 = vrot.slane %v459, 4
        %v487 = vrot.slane %v479, 2
        %vm488 = vcmask 1041408
        %v489 = vsel %vm488, %v419, %v485
        %vm490 = vcmask 1045508
        %v491 = vsel %vm490, %v486, %v487
        %v492 = vsel %vm310, %v489, %v491
        %494 = vst [vmem:[%s278] sm:$0xff] %v492
        %v495 = vld [vmem:[%s295] sm:$0xff]
        %s496 = scalar_lea.vmem %s278, 8 [#allocation4]
        %497 = vst [vmem:[%s496] sm:$0xff] %v495
        %s498 = sand.u32 %s158, 1
        %s499 = sand.u32 %s158, 1
        %s500 = smul.addr %s499, 16
        %s501 = scalar_lea.vmem [#allocation4], %s500
        // Predicated region
        $region45: #{upsample_forward.1} parent=39 // pred_check
          %p502 = pneg %p168
        $region46: #{upsample_forward.1} parent=39 // pred_check_branch
          %504 = sbr.rel (%p502) target = $region48
        $region47: #{upsample_forward.1} parent=39 // pred_region
          %s505 = smul.u32 4, %s22
          %s506 = smul.addr %s21, 16
          %s507 = sadd.s32 %s505, %s506
          %s508 = smul.addr %s507, 2
          %s509 = scalar_lea.vmem %s5, %s508
          // Predicated region
          $region49: #{upsample_forward.1} parent=47 // pred_check
            _
          $region50: #{upsample_forward.1} parent=47 // pred_check_branch
            %511 = sbr.rel (0) target = $region52
          $region51: #{upsample_forward.1} parent=47 // pred_region
            // Predicated region
            $region53: #{upsample_forward.1} parent=51 // pred_check
              _
            $region54: #{upsample_forward.1} parent=51 // pred_check_branch
              %513 = sbr.rel (0) target = $region56
            $region55: #{upsample_forward.1} parent=51 // pred_region
              // Predicated region
              $region68: #{upsample_forward.1} parent=55 // pred_check
                _
              $region69: #{upsample_forward.1} parent=55 // pred_check_branch
                %531 = sbr.rel (0) target = $region71
              $region70: #{upsample_forward.1} parent=55 // pred_region
                loop: start=0, step=1, limit=1
                $region72: #{upsample_forward.1} parent=70 // loop_pre_header
                  _
                $region73: #{upsample_forward.1} parent=70 // loop_header
                  %s533 = sphi 0, %s537
                  %p534 = scmp.ge.s32.totalorder %s533, 1
                  %s538 = sphi %s501, %s501
                  %s539 = sphi %s509, %s509
                $region74: #{upsample_forward.1} parent=70 // loop_header_branch
                  %536 = sbr.rel (%p534) target = $region78
                $region75: #{upsample_forward.1} parent=70 // loop_body
                  %v540 = vld [vmem:[%s538] sm:$0xff]
                  %541 = vst [vmem:[%s539] sm:$0xff] %v540
                  %v542 = vld [vmem:[%s538 + $0x8] sm:$0xff]
                  %543 = vst [vmem:[%s539 + $0x10] sm:$0xff] %v542
                $region76: #{upsample_forward.1} parent=70 // loop_footer
                  %s537 = sadd.s32 1, %s533
                $region77: #{upsample_forward.1} parent=70 // loop_footer_branch
                  %532 = sbr.rel target = $region73
                $region78: #{upsample_forward.1} parent=70 // loop_exit
                  _
              $region71: #{upsample_forward.1} parent=55 // pred_fallthru
                _
              // Predicated region
              $region79: #{upsample_forward.1} parent=55 // pred_check
                _
              $region80: #{upsample_forward.1} parent=55 // pred_check_branch
                %545 = sbr.rel target = $region82
              $region81: #{upsample_forward.1} parent=55 // pred_region
                _
              $region82: #{upsample_forward.1} parent=55 // pred_fallthru
                _
            $region56: #{upsample_forward.1} parent=51 // pred_fallthru
              _
            // Predicated region
            $region57: #{upsample_forward.1} parent=51 // pred_check
              _
            $region58: #{upsample_forward.1} parent=51 // pred_check_branch
              %515 = sbr.rel target = $region60
            $region59: #{upsample_forward.1} parent=51 // pred_region
              %s517 = ssub.s32 256, 1
              loop: start=0, step=1, limit=1
              $region61: #{upsample_forward.1} parent=59 // loop_pre_header
                _
              $region62: #{upsample_forward.1} parent=59 // loop_header
                %s519 = sphi 0, %s523
                %p520 = scmp.ge.s32.totalorder %s519, 1
                %s524 = sphi %s501, %s501
                %s525 = sphi %s509, %s509
              $region63: #{upsample_forward.1} parent=59 // loop_header_branch
                %522 = sbr.rel (%p520) target = $region67
              $region64: #{upsample_forward.1} parent=59 // loop_body
                %v526 = vld [vmem:[%s524] sm:%s517]
                %527 = vst [vmem:[%s525] sm:%s517] %v526
                %v528 = vld [vmem:[%s524 + $0x8] sm:%s517]
                %529 = vst [vmem:[%s525 + $0x10] sm:%s517] %v528
              $region65: #{upsample_forward.1} parent=59 // loop_footer
                %s523 = sadd.s32 1, %s519
              $region66: #{upsample_forward.1} parent=59 // loop_footer_branch
                %518 = sbr.rel target = $region62
              $region67: #{upsample_forward.1} parent=59 // loop_exit
                _
            $region60: #{upsample_forward.1} parent=51 // pred_fallthru
              _
          $region52: #{upsample_forward.1} parent=47 // pred_fallthru
            _
          %546 = vnop
        $region48: #{upsample_forward.1} parent=39 // pred_fallthru
          _
      $region40: #{upsample_forward.1} parent=5 // pred_fallthru
        _
      %p547 = scmp.le.s32.totalorder 2, %s12
      // Predicated region
      $region83: #{upsample_forward.1} parent=5 // pred_check
        %p548 = pneg %p547
      $region84: #{upsample_forward.1} parent=5 // pred_check_branch
        %550 = sbr.rel (%p548) target = $region86
      $region85: #{upsample_forward.1} parent=5 // pred_region
        %s551 = ssub.s32 %s12, 2
        // Predicated region
        $region87: #{upsample_forward.1} parent=85 // pred_check
          %p552 = pneg %p174
        $region88: #{upsample_forward.1} parent=85 // pred_check_branch
          %554 = sbr.rel (%p552) target = $region90
        $region89: #{upsample_forward.1} parent=85 // pred_region
          %s555 = sand.u32 %s159, 1
          %s556 = sand.u32 %s159, 1
          %s557 = smul.addr %s556, 16
          %s558 = scalar_lea.vmem [#allocation4], %s557
        $region90: #{upsample_forward.1} parent=85 // pred_fallthru
          _
      $region86: #{upsample_forward.1} parent=5 // pred_fallthru
        _
    $region6: #{upsample_forward.1} parent=1 // loop_footer
      %s16 = sadd.s32 1, %s12
    $region7: #{upsample_forward.1} parent=1 // loop_footer_branch
      %11 = sbr.rel target = $region3
    $region8: #{upsample_forward.1} parent=1 // loop_exit
      _
    %559 = vsyncpa [#allocation3], 1
    %s560 = scalar_lea.sflag [#allocation3], 1
    %561 = vsyncpa %s560, 1

</llo_original>
